<compile_context>
chip_gen: v5e
topology: v5e:2x2
jax: 0.10.0
libtpu: 0.0.40
codegen_flags: <defaults>
</compile_context>

<pallas_src>
import functools

import jax
import jax.numpy as jnp
from jax import lax
from jax.experimental import pallas as pl
from jax.experimental.pallas import tpu as pltpu


def _round_up(n: int, m: int) -> int:
    return ((n + m - 1) // m) * m


# ---------------------------------------------------------------------------
# Pallas kernel: fused landmark_localization head (one batch tile of x@W + b)
# ---------------------------------------------------------------------------
def _landmark_head_kernel(x_ref, w_ref, b_ref, o_ref):
    # x_ref: [TB, 128] f32   w_ref: [128, Lp] bf16   b_ref: [1, L] f32
    # o_ref: [TB, L]   f32   (L = n_landmarks, narrow output -> masked vst)
    xb = x_ref[...].astype(jnp.bfloat16)        # VPU cast, no extra HBM trip
    acc = jnp.dot(xb, w_ref[...], preferred_element_type=jnp.float32)
    l = o_ref.shape[-1]
    o_ref[...] = (acc[:, :l] + b_ref[...]).astype(o_ref.dtype)


def fold_landmark_head_params(w1, b1, w2, b2, *, lane_multiple=128):
    """Fold Linear(128,128)->Linear(128,L) (no nonlinearity between) into one
    affine map.  W is zero-padded to a 128-lane multiple (dense MXU operand,
    stays VMEM-resident); b stays narrow [1, L] f32.  Done ONCE outside the
    hot path.  Weight layout is (in_features, out_features)."""
    l = w2.shape[1]
    lp = _round_up(max(l, 1), lane_multiple)
    w = jnp.dot(w1, w2, preferred_element_type=jnp.float32)        # [128, L]
    b = jnp.dot(b1, w2, preferred_element_type=jnp.float32) + b2   # [1, L]
    w = jnp.pad(w, ((0, 0), (0, lp - l)))                          # pad in f32
    return w.astype(jnp.bfloat16), b.astype(jnp.float32)


def _choose_batch_tiling(B, *, max_tile=2048, min_steps=2):
    """Pick (tile_rows, padded_B).  Per-step fixed overhead (~0.35us) dominates
    this tiny kernel, so aim for very few grid steps; keep an even step count
    (>=2) so both v7x TensorCores get work; round the tile to 16 rows to keep
    row padding minimal for awkward batch sizes."""
    steps = max(min_steps, -(-B // max_tile))
    if steps > 1 and steps % 2:
        steps += 1
    tb = _round_up(-(-B // steps), 16)
    return tb, tb * steps


@functools.partial(jax.jit,
                   static_argnames=("max_tile", "min_steps", "small_batch_cutoff"))
def landmark_head_forward(x, w_folded, b_folded, *, max_tile=2048,
                          min_steps=2, small_batch_cutoff=64):
    """landmark_localization.forward: x [B, 128] f32 -> [B, n_landmarks] f32."""
    B, D = x.shape
    L = b_folded.shape[1]        # n_landmarks
    Lp = w_folded.shape[1]       # lane-padded width for the MXU operand

    if B < small_batch_cutoff:
        # Tiny batches (full-model path runs B=2): the matmul is dwarfed by
        # custom-call / DMA setup, let XLA fuse it in plain jnp.
        return jnp.dot(x, w_folded[:, :L].astype(jnp.float32)) + b_folded

    tb, Bp = _choose_batch_tiling(B, max_tile=max_tile, min_steps=min_steps)
    xp = x if Bp == B else jnp.pad(x, ((0, Bp - B), (0, 0)))

    out = pl.pallas_call(
        _landmark_head_kernel,
        out_shape=jax.ShapeDtypeStruct((Bp, L), jnp.float32),
        grid=(Bp // tb,),
        in_specs=[
            pl.BlockSpec((tb, D), lambda i: (i, 0)),   # x: new tile per step
            pl.BlockSpec((D, Lp), lambda i: (0, 0)),   # folded W: VMEM-resident
            pl.BlockSpec((1, L), lambda i: (0, 0)),    # folded b: VMEM-resident
        ],
        out_specs=pl.BlockSpec((tb, L), lambda i: (i, 0)),   # narrow output
        compiler_params=pltpu.CompilerParams(
            # Batch tiles are independent -> shard across TensorCores on v7x.
            dimension_semantics=("parallel",),
        ),
        cost_estimate=pl.CostEstimate(
            flops=2 * Bp * D * Lp,
            transcendentals=0,
            bytes_accessed=Bp * D * 4 + D * Lp * 2 + L * 4 + Bp * L * 4,
        ),
    )(xp, w_folded, b_folded)

    return out if Bp == B else out[:B]


# ---------------------------------------------------------------------------
# feature_extractor (CNN front end) in plain JAX, NHWC layout on TPU.
# TODO(synk): the conv/BatchNorm/ReLU/MaxPool/AvgPool stack is left to XLA
# (NHWC convs) rather than hand-written Pallas kernels; only the landmark
# head above is a Pallas kernel.
# ---------------------------------------------------------------------------
def _conv3x3_same_nhwc(x, w_oihw, b):
    w = jnp.transpose(w_oihw, (2, 3, 1, 0))     # OIHW -> HWIO (const-folded)
    y = lax.conv_general_dilated(
        x, w, window_strides=(1, 1), padding="SAME",
        dimension_numbers=("NHWC", "HWIO", "NHWC"))
    return y + b[None, None, None, :]


def _batchnorm2d_train_nhwc(x, eps=1e-5):
    # nn.BatchNorm2d at default init (gamma=1, beta=0), training-mode stats.
    mean = jnp.mean(x, axis=(0, 1, 2), keepdims=True)
    var = jnp.var(x, axis=(0, 1, 2), keepdims=True)
    return (x - mean) * lax.rsqrt(var + eps)


def _maxpool_2x2_nhwc(x):
    return lax.reduce_window(x, -jnp.inf, lax.max,
                             (1, 2, 2, 1), (1, 2, 2, 1), "VALID")


def _avgpool_nhwc(x, k):
    s = lax.reduce_window(x, 0.0, lax.add, (1, k, k, 1), (1, k, k, 1), "VALID")
    return s / float(k * k)


@jax.jit
def feature_extractor_forward(image_nchw, params):
    x = jnp.transpose(image_nchw, (0, 2, 3, 1))   # NCHW -> NHWC (TPU friendly)
    for p in params:
        x = jax.nn.relu(_batchnorm2d_train_nhwc(
            _conv3x3_same_nhwc(x, p["w1"], p["b1"])))
        x = jax.nn.relu(_batchnorm2d_train_nhwc(
            _conv3x3_same_nhwc(x, p["w2"], p["b2"])))
        x = _maxpool_2x2_nhwc(x)
    x = _avgpool_nhwc(x, 10)          # global average pooling (10x10 -> 1x1)
    return x.reshape(x.shape[0], -1)  # [B, fe_out_channels]


# ---------------------------------------------------------------------------
# Parameter initializers (matching the PyTorch init schemes in distribution).
# ---------------------------------------------------------------------------
def _xavier_uniform(key, fan_in, fan_out, dtype=jnp.float32):
    a = (6.0 / (fan_in + fan_out)) ** 0.5
    return jax.random.uniform(key, (fan_in, fan_out), dtype, minval=-a, maxval=a)


def _linear_bias(key, fan_in, fan_out, dtype=jnp.float32):
    bound = 1.0 / (fan_in ** 0.5)
    return jax.random.uniform(key, (1, fan_out), dtype, minval=-bound, maxval=bound)


def _kaiming_uniform_conv(key, cin, cout, ksize=3, dtype=jnp.float32):
    fan_in = cin * ksize * ksize
    bound = (6.0 / fan_in) ** 0.5
    return jax.random.uniform(key, (cout, cin, ksize, ksize), dtype,
                              minval=-bound, maxval=bound)


def _conv_bias(key, cin, cout, ksize=3, dtype=jnp.float32):
    bound = 1.0 / (cin * ksize * ksize) ** 0.5
    return jax.random.uniform(key, (cout,), dtype, minval=-bound, maxval=bound)


def init_feature_extractor_params(key, in_channels, out_channels):
    widths = [in_channels, 16, 32, 64, out_channels]
    keys = jax.random.split(key, len(widths) - 1)
    params = []
    for k, cin, cout in zip(keys, widths[:-1], widths[1:]):
        k1, k2, k3, k4 = jax.random.split(k, 4)
        params.append({
            "w1": _kaiming_uniform_conv(k1, cin, cout),
            "b1": _conv_bias(k2, cin, cout),
            "w2": _kaiming_uniform_conv(k3, cout, cout),
            "b2": _conv_bias(k4, cout, cout),
        })
    return params


if __name__ == "__main__":
    no_of_landmarks = 16
    fe_in_channels = 3
    fe_out_channels = 128   # feature dim consumed by the landmark head
    D = 128

    root = jax.random.PRNGKey(0)
    k_img, k_feat, k_fe, k_w1, k_b1, k_w2, k_b2 = jax.random.split(root, 7)

    # landmark_localization parameters (weights in (in, out) layout).
    w1 = _xavier_uniform(k_w1, D, D)
    b1 = _linear_bias(k_b1, D, D)
    w2 = _xavier_uniform(k_w2, D, no_of_landmarks)
    b2 = _linear_bias(k_b2, D, no_of_landmarks)

    # Fold the two Linears once, outside the hot path.
    w_folded, b_folded = fold_landmark_head_params(w1, b1, w2, b2)

    # --- 1) Batched head check: exercises the Pallas batch-tiled grid. ------
    B = 512
    x = jax.random.normal(k_feat, (B, D), jnp.float32)
    out = landmark_head_forward(x, w_folded, b_folded)
    out = jax.block_until_ready(out)
    assert out.shape == (B, no_of_landmarks)

    # Reference with the same bf16-operand / f32-accumulate math as the kernel.
    x_r = x.astype(jnp.bfloat16).astype(jnp.float32)
    w_r = w_folded.astype(jnp.float32)[:, :no_of_landmarks]
    ref_bf16 = x_r @ w_r + b_folded
    assert jnp.allclose(out, ref_bf16, atol=1e-2, rtol=1e-2), (
        "kernel mismatch vs bf16-operand reference")

    # Exact f32 reference of the original two-layer module math
    # (loose tolerance only for bf16 operand rounding).
    ref_f32 = (x @ w1 + b1) @ w2 + b2
    assert jnp.allclose(out, ref_f32, atol=5e-2, rtol=5e-2), (
        "kernel mismatch vs exact f32 two-layer reference")

    # --- 2) Full landmark_model forward: CNN features -> head. --------------
    # AvgPool2d(10) after four /2 pools requires a 160x160 input.
    image = jax.random.normal(k_img, (2, fe_in_channels, 160, 160), jnp.float32)
    fe_params = init_feature_extractor_params(k_fe, fe_in_channels,
                                              fe_out_channels)
    feats = feature_extractor_forward(image, fe_params)          # [2, 128]
    assert feats.shape == (2, fe_out_channels)
    landmarks = landmark_head_forward(feats, w_folded, b_folded)
    landmarks = jax.block_until_ready(landmarks)
    assert landmarks.shape == (2, no_of_landmarks)
    ref_lm = (feats @ w1 + b1) @ w2 + b2
    assert jnp.allclose(landmarks, ref_lm, atol=5e-2, rtol=5e-2), (
        "full-model head mismatch vs f32 reference")

    print("KERNEL_OK")
</pallas_src>

<mosaic_0001>
module attributes {stable_mosaic.version = 11 : i64} {
  func.func @_landmark_head_kernel(%arg0: i32, %arg1: memref<256x128xf32, #tpu.memory_space<vmem>>, %arg2: memref<128x128xbf16, #tpu.memory_space<vmem>>, %arg3: memref<1x16xf32, #tpu.memory_space<vmem>>, %arg4: memref<256x16xf32, #tpu.memory_space<vmem>>) attributes {dimension_semantics = [#tpu.dimension_semantics<parallel>], iteration_bounds = array<i64: 2>, scalar_prefetch = 0 : i64, scratch_operands = 0 : i64, tpu.core_type = #tpu.core_type<tc>, window_params = [{transform_indices = @transform_0, window_bounds = array<i64: 256, 128>}, {pipeline_mode = #tpu.pipeline_mode<synchronous>, transform_indices = @transform_1, window_bounds = array<i64: 128, 128>}, {pipeline_mode = #tpu.pipeline_mode<synchronous>, transform_indices = @transform_2, window_bounds = array<i64: 1, 16>}, {transform_indices = @transform_3, window_bounds = array<i64: 256, 16>}]} {
    %c0 = arith.constant 0 : index
    %c0_0 = arith.constant 0 : index
    %0 = vector.load %arg1[%c0, %c0_0] : memref<256x128xf32, #tpu.memory_space<vmem>>, vector<256x128xf32>
    %1 = arith.truncf %0 : vector<256x128xf32> to vector<256x128xbf16>
    %c0_1 = arith.constant 0 : index
    %c0_2 = arith.constant 0 : index
    %2 = vector.load %arg2[%c0_1, %c0_2] : memref<128x128xbf16, #tpu.memory_space<vmem>>, vector<128x128xbf16>
    %cst = arith.constant dense<0.000000e+00> : vector<256x128xf32>
    %3 = tpu.matmul %1, %2, %cst {dimension_numbers = #tpu.dot_dimension_numbers<[1], [0], [0], [1], [0, 0, 1, 1], [], []>} : vector<256x128xbf16>, vector<128x128xbf16>, vector<256x128xf32> -> vector<256x128xf32>
    %4 = vector.extract_strided_slice %3 {offsets = [0, 0], sizes = [256, 16], strides = [1, 1]} : vector<256x128xf32> to vector<256x16xf32>
    %c0_3 = arith.constant 0 : index
    %c0_4 = arith.constant 0 : index
    %5 = vector.load %arg3[%c0_3, %c0_4] : memref<1x16xf32, #tpu.memory_space<vmem>>, vector<1x16xf32>
    %6 = vector.broadcast %5 : vector<1x16xf32> to vector<256x16xf32>
    %7 = arith.addf %4, %6 : vector<256x16xf32>
    %c0_5 = arith.constant 0 : index
    %c0_6 = arith.constant 0 : index
    %8 = vector.load %arg4[%c0_5, %c0_6] : memref<256x16xf32, #tpu.memory_space<vmem>>, vector<256x16xf32>
    tpu.vector_store %arg4[%c0_5, %c0_6], %7 {strides = array<i32>} : memref<256x16xf32, #tpu.memory_space<vmem>>, vector<256x16xf32>,
    return
  }
  func.func @transform_0(%arg0: i32) -> (i32, i32) {
    %c0_i32 = arith.constant 0 : i32
    %c0_i32_0 = arith.constant 0 : i32
    return %arg0, %c0_i32 : i32, i32
  }
  func.func @transform_1(%arg0: i32) -> (i32, i32) {
    %c0_i32 = arith.constant 0 : i32
    %c0_i32_0 = arith.constant 0 : i32
    %c0_i32_1 = arith.constant 0 : i32
    return %c0_i32, %c0_i32_0 : i32, i32
  }
  func.func @transform_2(%arg0: i32) -> (i32, i32) {
    %c0_i32 = arith.constant 0 : i32
    %c0_i32_0 = arith.constant 0 : i32
    %c0_i32_1 = arith.constant 0 : i32
    return %c0_i32, %c0_i32_0 : i32, i32
  }
  func.func @transform_3(%arg0: i32) -> (i32, i32) {
    %c0_i32 = arith.constant 0 : i32
    %c0_i32_0 = arith.constant 0 : i32
    return %arg0, %c0_i32 : i32, i32
  }
}

</mosaic_0001>

<llo_original>
// kernel: landmark_head_forward.1
$region0: #{landmark_head_forward.1}
  #allocation0 [shape = 'u32[]', space=smem, size = 0x4, offset = 0x4, fixed_abs, tag = 'smem constant byte address 0x4 - core index']
  #allocation1 [shape = 'u32[72,128]{1,0:T(1,128)}', space=vmem, size = 0x9000, scoped, tag = 'internal scratch']
  %s0 = inlined_call_operand.hbm [shape: f32[512,128], index: 0, kind: input, shape index: {}]
  %s1 = inlined_call_operand.hbm [shape: bf16[128,128], index: 1, kind: input, shape index: {}]
  %s2 = inlined_call_operand.vmem [shape: f32[1,16], index: 2, kind: input, shape index: {}]
  %s3 = inlined_call_operand.vmem [shape: f32[512,16], index: 3, kind: output, shape index: {}]
  %s4 = sld [smem:[#allocation0]]
  $region53: #{landmark_head_forward.1} parent=0
    _
  %s6 = ssub.s32 1, %s4
  %s7 = scalar_select 0, %s6, %s4
  $region1: #{landmark_head_forward.1} parent=0
    #allocation2 [shape = 'u8[262144]{0}', space=vmem, size = 0x40000, scoped, tag = 'input window, operand 0']
    #allocation3 [shape = 's32[2]{0}', space=sflag, size = 0x8, scoped, tag = 'scoped memory for landmark_head_forward.1']
    #allocation4 [shape = 'u8[32768]{0}', space=vmem, size = 0x8000, scoped, tag = 'input window, operand 1, single buffered']
    #allocation5 [shape = 's32[1]{0}', space=sflag, size = 0x4, scoped, tag = 'scoped memory for landmark_head_forward.1']
    %8 = vsyncpa [#allocation3], 0
    %s9 = scalar_lea.sflag [#allocation3], 1
    %10 = vsyncpa %s9, 0
    %11 = vsyncpa [#allocation5], 0
    loop: start=0, step=1, limit=4
    $region2: #{landmark_head_forward.1} parent=1 // loop_pre_header
      _
    $region3: #{landmark_head_forward.1} parent=1 // loop_header
      %s13 = sphi 0, %s17
      %p14 = scmp.ge.s32.totalorder %s13, 4
      %s23 = sphi 0, %s25
      %s26 = sphi 0, %s23
      %s27 = sphi 0, %s26
      %s43 = sphi 0, %s27
      %s47 = sphi 0, %s47
      %s49 = sphi 0, %s47
      %s50 = sphi 0, %s49
      %s64 = sphi 0, %s50
      %s68 = sphi 0, %s68
      %s70 = sphi 0, %s68
      %s71 = sphi 0, %s70
      %s85 = sphi 0, %s71
      %s91 = sphi 0, %s93
      %s94 = sphi 0, %s91
      %s95 = sphi 0, %s94
      %s111 = sphi 0, %s95
    $region4: #{landmark_head_forward.1} parent=1 // loop_header_branch
      %16 = sbr.rel (%p14) target = $region8
    $region5: #{landmark_head_forward.1} parent=1 // loop_body
      %s18 = ssub.s32 %s13, 1
      %s19 = ssub.s32 %s13, 2
      %s20 = sadd.s32 %s13, 1
      %s21 = ssub.s32 %s13, %s20
      %p22 = scmp.eq.s32.totalorder %s21, 0
      %s24 = sadd.s32 %s23, 1
      %s25 = scalar_select %p22, %s23, %s24
      %p28 = pneg %p22
      %p29 = scmp.eq.s32.totalorder %s13, 1
      %p30 = por %p28, %p29
      %p31 = scmp.ne.s32.totalorder %s23, %s26
      %p32 = scmp.eq.s32.totalorder %s13, 0
      %p33 = por %p31, %p32
      %p34 = scmp.ne.s32.totalorder %s23, %s26
      %p35 = scmp.eq.s32.totalorder %s18, 1
      %p36 = por %p34, %p35
      %p37 = scmp.ne.s32.totalorder %s26, %s27
      %p38 = scmp.eq.s32.totalorder %s18, 0
      %p39 = por %p37, %p38
      %p40 = scmp.ne.s32.totalorder %s26, %s27
      %p41 = scmp.eq.s32.totalorder %s19, 1
      %p42 = por %p40, %p41
      %p44 = scmp.ne.s32.totalorder %s27, %s43
      %p45 = scmp.eq.s32.totalorder %s19, 0
      %p46 = por %p44, %p45
      %s48 = sadd.s32 %s47, 1
      %p51 = scmp.eq.s32.totalorder %s13, 1
      %p52 = scmp.ne.s32.totalorder %s47, %s49
      %p53 = scmp.eq.s32.totalorder %s13, 0
      %p54 = por %p52, %p53
      %p55 = scmp.ne.s32.totalorder %s47, %s49
      %p56 = scmp.eq.s32.totalorder %s18, 1
      %p57 = por %p55, %p56
      %p58 = scmp.ne.s32.totalorder %s49, %s50
      %p59 = scmp.eq.s32.totalorder %s18, 0
      %p60 = por %p58, %p59
      %p61 = scmp.ne.s32.totalorder %s49, %s50
      %p62 = scmp.eq.s32.totalorder %s19, 1
      %p63 = por %p61, %p62
      %p65 = scmp.ne.s32.totalorder %s50, %s64
      %p66 = scmp.eq.s32.totalorder %s19, 0
      %p67 = por %p65, %p66
      %s69 = sadd.s32 %s68, 1
      %p72 = scmp.eq.s32.totalorder %s13, 1
      %p73 = scmp.ne.s32.totalorder %s68, %s70
      %p74 = scmp.eq.s32.totalorder %s13, 0
      %p75 = por %p73, %p74
      %p76 = scmp.ne.s32.totalorder %s68, %s70
      %p77 = scmp.eq.s32.totalorder %s18, 1
      %p78 = por %p76, %p77
      %p79 = scmp.ne.s32.totalorder %s70, %s71
      %p80 = scmp.eq.s32.totalorder %s18, 0
      %p81 = por %p79, %p80
      %p82 = scmp.ne.s32.totalorder %s70, %s71
      %p83 = scmp.eq.s32.totalorder %s19, 1
      %p84 = por %p82, %p83
      %p86 = scmp.ne.s32.totalorder %s71, %s85
      %p87 = scmp.eq.s32.totalorder %s19, 0
      %p88 = por %p86, %p87
      %s89 = ssub.s32 %s13, %s20
      %p90 = scmp.eq.s32.totalorder %s89, 0
      %s92 = sadd.s32 %s91, 1
      %s93 = scalar_select %p90, %s91, %s92
      %p96 = pneg %p90
      %p97 = scmp.eq.s32.totalorder %s13, 1
      %p98 = por %p96, %p97
      %p99 = scmp.ne.s32.totalorder %s91, %s94
      %p100 = scmp.eq.s32.totalorder %s13, 0
      %p101 = por %p99, %p100
      %p102 = scmp.ne.s32.totalorder %s91, %s94
      %p103 = scmp.eq.s32.totalorder %s18, 1
      %p104 = por %p102, %p103
      %p105 = scmp.ne.s32.totalorder %s94, %s95
      %p106 = scmp.eq.s32.totalorder %s18, 0
      %p107 = por %p105, %p106
      %p108 = scmp.ne.s32.totalorder %s94, %s95
      %p109 = scmp.eq.s32.totalorder %s19, 1
      %p110 = por %p108, %p109
      %p112 = scmp.ne.s32.totalorder %s95, %s111
      %p113 = scmp.eq.s32.totalorder %s19, 0
      %p114 = por %p112, %p113
      %p115 = scmp.le.s32.totalorder 1, %s13
      %p116 = scmp.lt.s32.totalorder %s13, 3
      %p117 = pnand %p115, %p116
      %p118 = pneg %p117
      // Predicated region
      $region9: #{landmark_head_forward.1} parent=5 // pred_check
        _
      $region10: #{landmark_head_forward.1} parent=5 // pred_check_branch
        %120 = sbr.rel (%p117) target = $region12
      $region11: #{landmark_head_forward.1} parent=5 // pred_region
        %s121 = ssub.s32 %s13, 1
        // Predicated region
        $region13: #{landmark_head_forward.1} parent=11 // pred_check
          %p122 = pneg %p60
        $region14: #{landmark_head_forward.1} parent=11 // pred_check_branch
          %124 = sbr.rel (%p122) target = $region16
        $region15: #{landmark_head_forward.1} parent=11 // pred_region
          %126 = vsyncadd [#allocation5], 0
          %s127 = sshll.u32 %s1, 4
          %s128 = int_to_ptr.hbm [resolvable:$true] %s127
          %s129 = sshll.u32 [#allocation4], 4
          %s130 = int_to_ptr.vmem [resolvable:$true] %s129
          %135 = dma.hbm_to_vmem [thread:$0]  %s128, 1024, %s130, [#allocation5], 64, 64, 4
        $region16: #{landmark_head_forward.1} parent=11 // pred_fallthru
          _
        // Predicated region
        $region17: #{landmark_head_forward.1} parent=11 // pred_check
          %p136 = pneg %p81
        $region18: #{landmark_head_forward.1} parent=11 // pred_check_branch
          %138 = sbr.rel (%p136) target = $region20
        $region19: #{landmark_head_forward.1} parent=11 // pred_region
          _
        $region20: #{landmark_head_forward.1} parent=11 // pred_fallthru
          _
      $region12: #{landmark_head_forward.1} parent=5 // pred_fallthru
        _
      %p139 = scmp.lt.s32.totalorder %s13, 2
      // Predicated region
      $region21: #{landmark_head_forward.1} parent=5 // pred_check
        %p140 = pneg %p139
      $region22: #{landmark_head_forward.1} parent=5 // pred_check_branch
        %142 = sbr.rel (%p140) target = $region24
      $region23: #{landmark_head_forward.1} parent=5 // pred_region
        // Predicated region
        $region25: #{landmark_head_forward.1} parent=23 // pred_check
          %p143 = pneg %p33
        $region26: #{landmark_head_forward.1} parent=23 // pred_check_branch
          %145 = sbr.rel (%p143) target = $region28
        $region27: #{landmark_head_forward.1} parent=23 // pred_region
          %s146 = sand.u32 %s23, 1
          %s147 = scalar_lea.sflag [#allocation3], %s146
          %s148 = sand.u32 %s23, 1
          %s149 = smul.addr %s148, 256
          %s150 = scalar_lea.vmem [#allocation2], %s149
          %s151 = smul.u32 32, %s13
          %153 = vsyncadd %s147, 0
          %s154 = smul.addr %s151, 8
          %s155 = scalar_lea.hbm %s0, %s154
          %s156 = sshll.u32 %s155, 4
          %s157 = int_to_ptr.hbm [resolvable:$true] %s156
          %s158 = sshll.u32 %s150, 4
          %s159 = int_to_ptr.vmem [resolvable:$true] %s158
          %164 = dma.hbm_to_vmem [thread:$0]  %s157, 4096, %s159, %s147, 128, 128, 8
        $region28: #{landmark_head_forward.1} parent=23 // pred_fallthru
          _
      $region24: #{landmark_head_forward.1} parent=5 // pred_fallthru
        _
      %p165 = scmp.le.s32.totalorder 1, %s13
      %p166 = scmp.lt.s32.totalorder %s13, 3
      %p167 = pnand %p165, %p166
      %p168 = pneg %p167
      // Predicated region
      $region29: #{landmark_head_forward.1} parent=5 // pred_check
        _
      $region30: #{landmark_head_forward.1} parent=5 // pred_check_branch
        %170 = sbr.rel (%p167) target = $region32
      $region31: #{landmark_head_forward.1} parent=5 // pred_region
        %s171 = ssub.s32 %s13, 1
        %s172 = sand.u32 %s26, 1
        %s173 = scalar_lea.sflag [#allocation3], %s172
        %s174 = sand.u32 %s26, 1
        %s175 = smul.addr %s174, 256
        %s176 = scalar_lea.vmem [#allocation2], %s175
        // Predicated region
        $region33: #{landmark_head_forward.1} parent=31 // pred_check
          %p177 = pneg %p39
        $region34: #{landmark_head_forward.1} parent=31 // pred_check_branch
          %179 = sbr.rel (%p177) target = $region36
        $region35: #{landmark_head_forward.1} parent=31 // pred_region
          %181 = dma.done %s173, 4096
        $region36: #{landmark_head_forward.1} parent=31 // pred_fallthru
          _
        // Predicated region
        $region37: #{landmark_head_forward.1} parent=31 // pred_check
          %p182 = pneg %p60
        $region38: #{landmark_head_forward.1} parent=31 // pred_check_branch
          %184 = sbr.rel (%p182) target = $region40
        $region39: #{landmark_head_forward.1} parent=31 // pred_region
          %186 = dma.done [#allocation5], 1024
        $region40: #{landmark_head_forward.1} parent=31 // pred_fallthru
          _
        %s187 = sand.u32 %s26, 1
        %s188 = scalar_lea.sflag [#allocation3], %s187
        %s189 = sand.u32 %s26, 1
        %s190 = smul.addr %s189, 256
        %s191 = scalar_lea.vmem [#allocation2], %s190
        %p192 = pneg %p39
        %p193 = pneg %p36
        %p194 = pneg %p60
        %p195 = pneg %p57
        %p196 = pneg %p81
        %p197 = pneg %p78
        %p198 = pneg %p107
        %p199 = pneg %p104
        %s200 = smul.u32 32, %s18
        %p201 = scmp.lt.s32.totalorder %s200, 63
        %s202 = scalar_select %p201, %s200, 63
        %s203 = smul.addr %s202, 8
        %s204 = scalar_lea.vmem %s3, %s203
        %s205 = smul.u32 32, %s18
        %s206 = smul.u32 32, %s18
        %p207 = scmp.lt.s32.totalorder %s206, 63
        %s208 = scalar_select %p207, %s206, 63
        %s209 = smul.addr %s208, 8
        %s210 = scalar_lea.vmem %s3, %s209
        %s211 = smul.u32 32, %s18
        %v212 = vld [vmem:[%s176] sm:$0xff]
        %v213 = vld [vmem:[%s176 + $0x8] sm:$0xff]
        %v214 = vld [vmem:[%s176 + $0x10] sm:$0xff]
        %v215 = vld [vmem:[%s176 + $0x18] sm:$0xff]
        %v216 = vld [vmem:[%s176 + $0x20] sm:$0xff]
        %v217 = vld [vmem:[%s176 + $0x28] sm:$0xff]
        %v218 = vld [vmem:[%s176 + $0x30] sm:$0xff]
        %v219 = vld [vmem:[%s176 + $0x38] sm:$0xff]
        %v220 = vld [vmem:[%s176 + $0x40] sm:$0xff]
        %v221 = vld [vmem:[%s176 + $0x48] sm:$0xff]
        %v222 = vld [vmem:[%s176 + $0x50] sm:$0xff]
        %v223 = vld [vmem:[%s176 + $0x58] sm:$0xff]
        %v224 = vld [vmem:[%s176 + $0x60] sm:$0xff]
        %v225 = vld [vmem:[%s176 + $0x68] sm:$0xff]
        %v226 = vld [vmem:[%s176 + $0x70] sm:$0xff]
        %v227 = vld [vmem:[%s176 + $0x78] sm:$0xff]
        %v228 = vld [vmem:[%s176 + $0x80] sm:$0xff]
        %v229 = vld [vmem:[%s176 + $0x88] sm:$0xff]
        %v230 = vld [vmem:[%s176 + $0x90] sm:$0xff]
        %v231 = vld [vmem:[%s176 + $0x98] sm:$0xff]
        %v232 = vld [vmem:[%s176 + $0xa0] sm:$0xff]
        %v233 = vld [vmem:[%s176 + $0xa8] sm:$0xff]
        %v234 = vld [vmem:[%s176 + $0xb0] sm:$0xff]
        %v235 = vld [vmem:[%s176 + $0xb8] sm:$0xff]
        %v236 = vld [vmem:[%s176 + $0xc0] sm:$0xff]
        %v237 = vld [vmem:[%s176 + $0xc8] sm:$0xff]
        %v238 = vld [vmem:[%s176 + $0xd0] sm:$0xff]
        %v239 = vld [vmem:[%s176 + $0xd8] sm:$0xff]
        %v240 = vld [vmem:[%s176 + $0xe0] sm:$0xff]
        %v241 = vld [vmem:[%s176 + $0xe8] sm:$0xff]
        %v242 = vld [vmem:[%s176 + $0xf0] sm:$0xff]
        %v243 = vld [vmem:[%s176 + $0xf8] sm:$0xff]
        %v244 = vpack.c.bf16 %v213, %v212
        %v245 = vpack.c.bf16 %v215, %v214
        %v246 = vpack.c.bf16 %v217, %v216
        %v247 = vpack.c.bf16 %v219, %v218
        %v248 = vpack.c.bf16 %v221, %v220
        %v249 = vpack.c.bf16 %v223, %v222
        %v250 = vpack.c.bf16 %v225, %v224
        %v251 = vpack.c.bf16 %v227, %v226
        %v252 = vpack.c.bf16 %v229, %v228
        %v253 = vpack.c.bf16 %v231, %v230
        %v254 = vpack.c.bf16 %v233, %v232
        %v255 = vpack.c.bf16 %v235, %v234
        %v256 = vpack.c.bf16 %v237, %v236
        %v257 = vpack.c.bf16 %v239, %v238
        %v258 = vpack.c.bf16 %v241, %v240
        %v259 = vpack.c.bf16 %v243, %v242
        %v260 = vld [vmem:[#allocation4] sm:$0xf]
        %v261 = vld [vmem:[#allocation4 + $0x4] sm:$0xf]
        %v262 = vld [vmem:[#allocation4 + $0x8] sm:$0xf]
        %v263 = vld [vmem:[#allocation4 + $0xc] sm:$0xf]
        %v264 = vld [vmem:[#allocation4 + $0x10] sm:$0xf]
        %v265 = vld [vmem:[#allocation4 + $0x14] sm:$0xf]
        %v266 = vld [vmem:[#allocation4 + $0x18] sm:$0xf]
        %v267 = vld [vmem:[#allocation4 + $0x1c] sm:$0xf]
        %v268 = vld [vmem:[#allocation4 + $0x20] sm:$0xf]
        %v269 = vld [vmem:[#allocation4 + $0x24] sm:$0xf]
        %v270 = vld [vmem:[#allocation4 + $0x28] sm:$0xf]
        %v271 = vld [vmem:[#allocation4 + $0x2c] sm:$0xf]
        %v272 = vld [vmem:[#allocation4 + $0x30] sm:$0xf]
        %v273 = vld [vmem:[#allocation4 + $0x34] sm:$0xf]
        %v274 = vld [vmem:[#allocation4 + $0x38] sm:$0xf]
        %v275 = vld [vmem:[#allocation4 + $0x3c] sm:$0xf]
        %v292 = vunpack.c.l.b16 %v260
        %v293 = vunpack.c.l.b16 %v261
        %v294 = vunpack.c.l.b16 %v262
        %v295 = vunpack.c.l.b16 %v263
        %v296 = vunpack.c.l.b16 %v264
        %v297 = vunpack.c.l.b16 %v265
        %v298 = vunpack.c.l.b16 %v266
        %v299 = vunpack.c.l.b16 %v267
        %v300 = vunpack.c.l.b16 %v268
        %v301 = vunpack.c.l.b16 %v269
        %v302 = vunpack.c.l.b16 %v270
        %v303 = vunpack.c.l.b16 %v271
        %v304 = vunpack.c.l.b16 %v272
        %v305 = vunpack.c.l.b16 %v273
        %v306 = vunpack.c.l.b16 %v274
        %v307 = vunpack.c.l.b16 %v275
        %v308 = vpack.c.b16 %v293, %v292
        %v309 = vpack.c.b16 %v295, %v294
        %v310 = vpack.c.b16 %v297, %v296
        %v311 = vpack.c.b16 %v299, %v298
        %v312 = vpack.c.b16 %v301, %v300
        %v313 = vpack.c.b16 %v303, %v302
        %v314 = vpack.c.b16 %v305, %v304
        %v315 = vpack.c.b16 %v307, %v306
        %324 = vmatpush.bf16.msra.mxu0 %v315
        %325 = vmatpush.bf16.msra.mxu0 %v314
        %326 = vmatpush.bf16.msra.mxu0 %v313
        %327 = vmatpush.bf16.msra.mxu0 %v312
        %328 = vmatpush.bf16.msra.mxu0 %v311
        %329 = vmatpush.bf16.msra.mxu0 %v310
        %330 = vmatpush.bf16.msra.mxu0 %v309
        %331 = vmatpush.bf16.msra.mxu0 %v308
        %332 = vmatmul.bf16.gmra.mxu0 %v244
        %v333 = vpop.f32.mrf.mxu0
        %v334 = vadd.f32 0.0, %v333
        %v335 = vpop.f32.mrf.mxu0
        %v336 = vadd.f32 0.0, %v335
        %337 = vmatmul.bf16.gmra.mxu0 %v245
        %v338 = vpop.f32.mrf.mxu0
        %v339 = vadd.f32 0.0, %v338
        %v340 = vpop.f32.mrf.mxu0
        %v341 = vadd.f32 0.0, %v340
        %342 = vmatmul.bf16.gmra.mxu0 %v246
        %v343 = vpop.f32.mrf.mxu0
        %v344 = vadd.f32 0.0, %v343
        %v345 = vpop.f32.mrf.mxu0
        %v346 = vadd.f32 0.0, %v345
        %347 = vmatmul.bf16.gmra.mxu0 %v247
        %v348 = vpop.f32.mrf.mxu0
        %v349 = vadd.f32 0.0, %v348
        %v350 = vpop.f32.mrf.mxu0
        %v351 = vadd.f32 0.0, %v350
        %352 = vmatmul.bf16.gmra.mxu0 %v248
        %v353 = vpop.f32.mrf.mxu0
        %v354 = vadd.f32 0.0, %v353
        %v355 = vpop.f32.mrf.mxu0
        %v356 = vadd.f32 0.0, %v355
        %357 = vmatmul.bf16.gmra.mxu0 %v249
        %v358 = vpop.f32.mrf.mxu0
        %v359 = vadd.f32 0.0, %v358
        %v360 = vpop.f32.mrf.mxu0
        %v361 = vadd.f32 0.0, %v360
        %362 = vmatmul.bf16.gmra.mxu0 %v250
        %v363 = vpop.f32.mrf.mxu0
        %v364 = vadd.f32 0.0, %v363
        %v365 = vpop.f32.mrf.mxu0
        %v366 = vadd.f32 0.0, %v365
        %367 = vmatmul.bf16.gmra.mxu0 %v251
        %v368 = vpop.f32.mrf.mxu0
        %v369 = vadd.f32 0.0, %v368
        %v370 = vpop.f32.mrf.mxu0
        %v371 = vadd.f32 0.0, %v370
        %372 = vmatmul.bf16.gmra.mxu0 %v252
        %v373 = vpop.f32.mrf.mxu0
        %v374 = vadd.f32 0.0, %v373
        %v375 = vpop.f32.mrf.mxu0
        %v376 = vadd.f32 0.0, %v375
        %377 = vmatmul.bf16.gmra.mxu0 %v253
        %v378 = vpop.f32.mrf.mxu0
        %v379 = vadd.f32 0.0, %v378
        %v380 = vpop.f32.mrf.mxu0
        %v381 = vadd.f32 0.0, %v380
        %382 = vmatmul.bf16.gmra.mxu0 %v254
        %v383 = vpop.f32.mrf.mxu0
        %v384 = vadd.f32 0.0, %v383
        %v385 = vpop.f32.mrf.mxu0
        %v386 = vadd.f32 0.0, %v385
        %387 = vmatmul.bf16.gmra.mxu0 %v255
        %v388 = vpop.f32.mrf.mxu0
        %v389 = vadd.f32 0.0, %v388
        %v390 = vpop.f32.mrf.mxu0
        %v391 = vadd.f32 0.0, %v390
        %392 = vmatmul.bf16.gmra.mxu0 %v256
        %v393 = vpop.f32.mrf.mxu0
        %v394 = vadd.f32 0.0, %v393
        %v395 = vpop.f32.mrf.mxu0
        %v396 = vadd.f32 0.0, %v395
        %397 = vmatmul.bf16.gmra.mxu0 %v257
        %v398 = vpop.f32.mrf.mxu0
        %v399 = vadd.f32 0.0, %v398
        %v400 = vpop.f32.mrf.mxu0
        %v401 = vadd.f32 0.0, %v400
        %402 = vmatmul.bf16.gmra.mxu0 %v258
        %v403 = vpop.f32.mrf.mxu0
        %v404 = vadd.f32 0.0, %v403
        %v405 = vpop.f32.mrf.mxu0
        %v406 = vadd.f32 0.0, %v405
        %407 = vmatmul.bf16.gmra.mxu0 %v259
        %v408 = vpop.f32.mrf.mxu0
        %v409 = vadd.f32 0.0, %v408
        %v410 = vpop.f32.mrf.mxu0
        %v411 = vadd.f32 0.0, %v410
        %412 = vdwg.mxu0
        %v413 = vld [vmem:[%s2] sm:$0x1]
        %v415 = vperm.slane %v413, 0
        %v417 = vadd.f32 %v334, %v415
        %v418 = vadd.f32 %v336, %v415
        %v419 = vadd.f32 %v339, %v415
        %v420 = vadd.f32 %v341, %v415
        %v421 = vadd.f32 %v344, %v415
        %v422 = vadd.f32 %v346, %v415
        %v423 = vadd.f32 %v349, %v415
        %v424 = vadd.f32 %v351, %v415
        %v425 = vadd.f32 %v354, %v415
        %v426 = vadd.f32 %v356, %v415
        %v427 = vadd.f32 %v359, %v415
        %v428 = vadd.f32 %v361, %v415
        %v429 = vadd.f32 %v364, %v415
        %v430 = vadd.f32 %v366, %v415
        %v431 = vadd.f32 %v369, %v415
        %v432 = vadd.f32 %v371, %v415
        %v433 = vadd.f32 %v374, %v415
        %v434 = vadd.f32 %v376, %v415
        %v435 = vadd.f32 %v379, %v415
        %v436 = vadd.f32 %v381, %v415
        %v437 = vadd.f32 %v384, %v415
        %v438 = vadd.f32 %v386, %v415
        %v439 = vadd.f32 %v389, %v415
        %v440 = vadd.f32 %v391, %v415
        %v441 = vadd.f32 %v394, %v415
        %v442 = vadd.f32 %v396, %v415
        %v443 = vadd.f32 %v399, %v415
        %v444 = vadd.f32 %v401, %v415
        %v445 = vadd.f32 %v404, %v415
        %v446 = vadd.f32 %v406, %v415
        %v447 = vadd.f32 %v409, %v415
        %v448 = vadd.f32 %v411, %v415
        %vm449 = vcmask 130048
        %450 = vst.msk [vmem:[%s210] sm:$0xff] %vm449, %v417
        %451 = vst.msk [vmem:[%s210 + $0x8] sm:$0xff] %vm449, %v418
        %452 = vst.msk [vmem:[%s210 + $0x10] sm:$0xff] %vm449, %v419
        %453 = vst.msk [vmem:[%s210 + $0x18] sm:$0xff] %vm449, %v420
        %454 = vst.msk [vmem:[%s210 + $0x20] sm:$0xff] %vm449, %v421
        %455 = vst.msk [vmem:[%s210 + $0x28] sm:$0xff] %vm449, %v422
        %456 = vst.msk [vmem:[%s210 + $0x30] sm:$0xff] %vm449, %v423
        %457 = vst.msk [vmem:[%s210 + $0x38] sm:$0xff] %vm449, %v424
        %458 = vst.msk [vmem:[%s210 + $0x40] sm:$0xff] %vm449, %v425
        %459 = vst.msk [vmem:[%s210 + $0x48] sm:$0xff] %vm449, %v426
        %460 = vst.msk [vmem:[%s210 + $0x50] sm:$0xff] %vm449, %v427
        %461 = vst.msk [vmem:[%s210 + $0x58] sm:$0xff] %vm449, %v428
        %462 = vst.msk [vmem:[%s210 + $0x60] sm:$0xff] %vm449, %v429
        %463 = vst.msk [vmem:[%s210 + $0x68] sm:$0xff] %vm449, %v430
        %464 = vst.msk [vmem:[%s210 + $0x70] sm:$0xff] %vm449, %v431
        %465 = vst.msk [vmem:[%s210 + $0x78] sm:$0xff] %vm449, %v432
        %466 = vst.msk [vmem:[%s210 + $0x80] sm:$0xff] %vm449, %v433
        %467 = vst.msk [vmem:[%s210 + $0x88] sm:$0xff] %vm449, %v434
        %468 = vst.msk [vmem:[%s210 + $0x90] sm:$0xff] %vm449, %v435
        %469 = vst.msk [vmem:[%s210 + $0x98] sm:$0xff] %vm449, %v436
        %470 = vst.msk [vmem:[%s210 + $0xa0] sm:$0xff] %vm449, %v437
        %471 = vst.msk [vmem:[%s210 + $0xa8] sm:$0xff] %vm449, %v438
        %472 = vst.msk [vmem:[%s210 + $0xb0] sm:$0xff] %vm449, %v439
        %473 = vst.msk [vmem:[%s210 + $0xb8] sm:$0xff] %vm449, %v440
        %474 = vst.msk [vmem:[%s210 + $0xc0] sm:$0xff] %vm449, %v441
        %475 = vst.msk [vmem:[%s210 + $0xc8] sm:$0xff] %vm449, %v442
        %476 = vst.msk [vmem:[%s210 + $0xd0] sm:$0xff] %vm449, %v443
        %477 = vst.msk [vmem:[%s210 + $0xd8] sm:$0xff] %vm449, %v444
        %478 = vst.msk [vmem:[%s210 + $0xe0] sm:$0xff] %vm449, %v445
        %479 = vst.msk [vmem:[%s210 + $0xe8] sm:$0xff] %vm449, %v446
        %480 = vst.msk [vmem:[%s210 + $0xf0] sm:$0xff] %vm449, %v447
        %481 = vst.msk [vmem:[%s210 + $0xf8] sm:$0xff] %vm449, %v448
        %s482 = smul.u32 32, %s18
        %p483 = scmp.lt.s32.totalorder %s482, 63
        %s484 = scalar_select %p483, %s482, 63
        %s485 = smul.addr %s484, 8
        %s486 = scalar_lea.vmem %s3, %s485
        // Predicated region
        $region41: #{landmark_head_forward.1} parent=31 // pred_check
          %p487 = pneg %p104
        $region42: #{landmark_head_forward.1} parent=31 // pred_check_branch
          %489 = sbr.rel (%p487) target = $region44
        $region43: #{landmark_head_forward.1} parent=31 // pred_region
          %s490 = smul.u32 32, %s18
        $region44: #{landmark_head_forward.1} parent=31 // pred_fallthru
          _
      $region32: #{landmark_head_forward.1} parent=5 // pred_fallthru
        _
      %p491 = scmp.le.s32.totalorder 2, %s13
      // Predicated region
      $region45: #{landmark_head_forward.1} parent=5 // pred_check
        %p492 = pneg %p491
      $region46: #{landmark_head_forward.1} parent=5 // pred_check_branch
        %494 = sbr.rel (%p492) target = $region48
      $region47: #{landmark_head_forward.1} parent=5 // pred_region
        %s495 = ssub.s32 %s13, 2
        // Predicated region
        $region49: #{landmark_head_forward.1} parent=47 // pred_check
          %p496 = pneg %p110
        $region50: #{landmark_head_forward.1} parent=47 // pred_check_branch
          %498 = sbr.rel (%p496) target = $region52
        $region51: #{landmark_head_forward.1} parent=47 // pred_region
          %s499 = smul.u32 32, %s19
          %p500 = scmp.lt.s32.totalorder %s499, 63
          %s501 = scalar_select %p500, %s499, 63
          %s502 = smul.addr %s501, 8
          %s503 = scalar_lea.vmem %s3, %s502
        $region52: #{landmark_head_forward.1} parent=47 // pred_fallthru
          _
      $region48: #{landmark_head_forward.1} parent=5 // pred_fallthru
        _
    $region6: #{landmark_head_forward.1} parent=1 // loop_footer
      %s17 = sadd.s32 1, %s13
    $region7: #{landmark_head_forward.1} parent=1 // loop_footer_branch
      %12 = sbr.rel target = $region3
    $region8: #{landmark_head_forward.1} parent=1 // loop_exit
      _
    %504 = vsyncpa [#allocation3], 1
    %s505 = scalar_lea.sflag [#allocation3], 1
    %506 = vsyncpa %s505, 1
    %507 = vsyncpa [#allocation5], 1

</llo_original>
